<compile_context>
chip_gen: v7x
topology: tpu7x:2x2x1
jax: 0.10.0
libtpu: 0.0.40
codegen_flags: <defaults>
</compile_context>

<pallas_src>
import functools

import jax
import jax.numpy as jnp
from jax import lax
from jax.experimental import pallas as pl
from jax.experimental.pallas import tpu as pltpu


def _round_up(x, m):
    return (x + m - 1) // m * m


def _physical_vmem_bytes():
    # Per-TensorCore VMEM capacity; fall back to the smallest shipping config
    # (v7x: 64 MiB) if the query is unavailable.
    try:
        return int(pltpu.get_tpu_info().vmem_capacity_bytes)
    except Exception:
        return 64 * 1024 * 1024


@functools.lru_cache(maxsize=None)
def _single_buffer_supported():
    """One-time feature probe: can we single-buffer a constant block via
    BlockSpec(..., pipeline_mode=pl.Buffered(1))?  The probe runs a tiny
    throwaway kernel so any failure is attributable to the *feature*, not to
    the real kernel's shapes/VMEM (no broad except around the real build)."""
    if not hasattr(pl, "Buffered"):
        return False
    try:
        spec = pl.BlockSpec((8, 128), lambda i: (0, 0), pipeline_mode=pl.Buffered(1))
    except TypeError:
        return False

    def _copy(x_ref, o_ref):
        o_ref[...] = x_ref[...]

    try:
        x = jnp.zeros((8, 128), jnp.float32)
        out = pl.pallas_call(
            _copy,
            out_shape=jax.ShapeDtypeStruct((8, 128), jnp.float32),
            grid_spec=pltpu.PrefetchScalarGridSpec(
                num_scalar_prefetch=0,
                grid=(1,),
                in_specs=[spec],
                out_specs=pl.BlockSpec((8, 128), lambda i: (0, 0)),
            ),
        )(x)
        jax.block_until_ready(out)
        return True
    except Exception:
        return False


def _bert_head_transform_kernel(x_ref, w_ref, p_ref, o_ref, *, eps, approximate_gelu):
    # x_ref: (tm, H)   w_ref: (H, H) = W^T (matmul dtype)   p_ref: (3, H) f32
    x = x_ref[...]
    w = w_ref[...]
    if x.dtype != w.dtype:
        # Feed both MXU operands in the weight's dtype (e.g. bf16) to avoid
        # the slow mixed/f32 MXU path; accumulation stays f32.
        x = x.astype(w.dtype)
    h = jnp.dot(x, w, preferred_element_type=jnp.float32)

    params = p_ref[...]                               # (3, H) f32
    h = h + params[0:1, :]                            # + bias

    if approximate_gelu:
        # tanh GELU: routes the transcendental to the EUP slot, off the VALU
        # critical path (useful when bf16 matmuls make the VALU binding).
        c = jnp.float32(0.7978845608028654)           # sqrt(2/pi)
        h = 0.5 * h * (1.0 + jnp.tanh(c * (h + jnp.float32(0.044715) * h * h * h)))
    else:
        # Exact GELU (matches HF ACT2FN["gelu"] / torch GELU default).
        h = 0.5 * h * (1.0 + lax.erf(h * jnp.float32(0.7071067811865476)))

    # LayerNorm over the hidden (lane) dimension; statistics in f32.
    mean = jnp.mean(h, axis=-1, keepdims=True)
    centered = h - mean
    var = jnp.mean(centered * centered, axis=-1, keepdims=True)
    normed = centered * lax.rsqrt(var + jnp.float32(eps))
    out = normed * params[1:2, :] + params[2:3, :]

    o_ref[...] = out.astype(o_ref.dtype)


def bert_prediction_head_transform(
    x, weight_t, bias, gamma, beta, *,
    eps=1e-12, tm=512, matmul_dtype=None, approximate_gelu=False,
    x_buffers=2, vmem_limit_bytes=None,
):
    """Fused dense + GELU + LayerNorm.

    x:            [B, S, H] activations (f32 or bf16).
    weight_t:     [H_in, H_out] dense weight, ALREADY transposed from the
                  PyTorch nn.Linear layout [out, in] (transpose once at init).
    bias, gamma, beta: [H].
    matmul_dtype: dtype fed to the MXU (default x.dtype).  Pass jnp.bfloat16
                  for the fast bf16 MXU path when tolerance allows.
    x_buffers:    pipeline depth for the streamed x tile (3 can hide exposed
                  DMA on v6e in the memory-bound regime).
    """
    B, S, H = x.shape
    assert weight_t.shape == (H, H), "weight_t must be [H_in, H_out]"
    tokens = B * S

    # No pad/slice HBM round-trip: ragged last token block is masked by Pallas.
    x2d = x.reshape(tokens, H)

    mm_dtype = jnp.dtype(matmul_dtype) if matmul_dtype is not None else jnp.dtype(x.dtype)
    weight_t = weight_t.astype(mm_dtype)   # one-time cast; guards mixed-dtype dot

    # Pack bias / gamma / beta into one (3, H) f32 operand -> one DMA stream,
    # explicit cast so mixed-precision params can't silently change the dtype.
    params = jnp.stack([bias.astype(jnp.float32),
                        gamma.astype(jnp.float32),
                        beta.astype(jnp.float32)], axis=0)

    # --- token tile ----------------------------------------------------------
    tm = max(8, min(int(tm), _round_up(tokens, 8)))
    tm = _round_up(tm, 8)
    # Keep >= 4 grid steps where possible: shards the 'parallel' token axis
    # across v7x's two TensorCores and keeps double-buffering warm.
    while tm > 8 and pl.cdiv(tokens, tm) < 4:
        nxt = max(8, _round_up(tm // 2, 8))
        if nxt == tm:
            break
        tm = nxt
    grid = (pl.cdiv(tokens, tm),)

    # --- VMEM budget ----------------------------------------------------------
    single_buffer_weight = _single_buffer_supported()
    x_bytes = jnp.dtype(x.dtype).itemsize
    out_bytes = x_bytes
    w_bytes = mm_dtype.itemsize
    phys_vmem = _physical_vmem_bytes()

    w_buffers = 1 if single_buffer_weight else 2
    w_resident = w_buffers * H * H * w_bytes
    assert w_resident <= phys_vmem // 2, (
        f"Resident (H,H) weight ({w_resident / 2**20:.1f} MiB) exceeds the VMEM "
        f"budget on this chip ({phys_vmem / 2**20:.0f} MiB per core); hidden "
        "sizes this large need an N-tiled weight with a two-pass LayerNorm.")
    # TODO(synk): N-tiled weight + two-pass LayerNorm path for very large H.

    if vmem_limit_bytes is None:
        needed = (
            w_resident                               # resident W^T
            + max(2, int(x_buffers)) * tm * H * x_bytes   # x tiles
            + 2 * tm * H * out_bytes                 # out tiles
            + 2 * 8 * H * 4                          # packed params (sublane-padded)
            + 5 * tm * H * 4                         # f32 GELU/LN intermediates
        )
        vmem_limit_bytes = max(32 * 1024 * 1024, (needed * 5) // 4)
    vmem_limit_bytes = int(min(vmem_limit_bytes, phys_vmem))   # never exceed physical

    cost = pl.CostEstimate(
        flops=2 * tokens * H * H + 12 * tokens * H,
        transcendentals=tokens * H,
        bytes_accessed=(tokens * H * (x_bytes + out_bytes)
                        + H * H * w_bytes + 3 * H * 4),
    )

    # --- BlockSpecs -----------------------------------------------------------
    if single_buffer_weight:
        w_spec = pl.BlockSpec((H, H), lambda i: (0, 0), pipeline_mode=pl.Buffered(1))
        if int(x_buffers) != 2:
            x_spec = pl.BlockSpec((tm, H), lambda i: (i, 0),
                                  pipeline_mode=pl.Buffered(int(x_buffers)))
        else:
            x_spec = pl.BlockSpec((tm, H), lambda i: (i, 0))
    else:
        w_spec = pl.BlockSpec((H, H), lambda i: (0, 0))
        x_spec = pl.BlockSpec((tm, H), lambda i: (i, 0))

    kernel = functools.partial(
        _bert_head_transform_kernel, eps=float(eps), approximate_gelu=approximate_gelu)

    out2d = pl.pallas_call(
        kernel,
        out_shape=jax.ShapeDtypeStruct((tokens, H), x.dtype),
        grid_spec=pltpu.PrefetchScalarGridSpec(
            num_scalar_prefetch=0,
            grid=grid,
            in_specs=[
                x_spec,                                   # x tile (streamed)
                w_spec,                                   # W^T (resident)
                pl.BlockSpec((3, H), lambda i: (0, 0)),   # bias/gamma/beta
            ],
            out_specs=pl.BlockSpec((tm, H), lambda i: (i, 0)),
        ),
        compiler_params=pltpu.CompilerParams(
            dimension_semantics=("parallel",),
            vmem_limit_bytes=vmem_limit_bytes,
        ),
        cost_estimate=cost,
    )(x2d, weight_t, params)

    return out2d.reshape(B, S, H)


if __name__ == "__main__":
    # Small, BERT-like shapes: batch=2, seq=8, hidden=32
    B, S, H = 2, 8, 32
    key = jax.random.PRNGKey(0)
    kx, kw, kb = jax.random.split(key, 3)

    x = jax.random.normal(kx, (B, S, H), dtype=jnp.float32)
    # Deterministic synthetic parameters (nn.Linear(H, H) + nn.LayerNorm(H))
    weight = jax.random.normal(kw, (H, H), dtype=jnp.float32) * 0.02   # [out, in]
    bias = jax.random.normal(kb, (H,), dtype=jnp.float32) * 0.02
    gamma = jnp.ones((H,), dtype=jnp.float32)    # LayerNorm weight
    beta = jnp.zeros((H,), dtype=jnp.float32)    # LayerNorm bias

    # Pre-transpose the dense weight ONCE (init-time), not per forward call.
    weight_t = jnp.asarray(weight.T)             # [H_in, H_out]

    out = bert_prediction_head_transform(x, weight_t, bias, gamma, beta, eps=1e-12)
    jax.block_until_ready(out)

    # Pure-JAX reference check (same math, outside Pallas)
    h_ref = x @ weight.T + bias
    h_ref = 0.5 * h_ref * (1.0 + lax.erf(h_ref / jnp.sqrt(2.0)))
    mu = jnp.mean(h_ref, axis=-1, keepdims=True)
    var = jnp.mean((h_ref - mu) ** 2, axis=-1, keepdims=True)
    ref = (h_ref - mu) / jnp.sqrt(var + 1e-12) * gamma + beta

    assert out.shape == x.shape
    assert jnp.allclose(out, ref, atol=2e-5, rtol=2e-5), "mismatch vs reference (f32)"

    # Smoke-test the bf16 MXU path (loose tolerance; output is LN-scale ~1).
    out_bf16 = bert_prediction_head_transform(
        x, weight_t, bias, gamma, beta, eps=1e-12, matmul_dtype=jnp.bfloat16)
    jax.block_until_ready(out_bf16)
    assert out_bf16.shape == x.shape
    assert jnp.allclose(out_bf16, ref, atol=1e-1, rtol=1e-1), "mismatch vs reference (bf16)"

    print("KERNEL_OK")
</pallas_src>

<mosaic_0001>
module attributes {stable_mosaic.version = 11 : i64} {
  func.func @_copy(%arg0: i32, %arg1: memref<8x128xf32, #tpu.memory_space<vmem>>, %arg2: memref<8x128xf32, #tpu.memory_space<vmem>>) attributes {dimension_semantics = [#tpu.dimension_semantics<arbitrary>], iteration_bounds = array<i64: 1>, scalar_prefetch = 0 : i64, scratch_operands = 0 : i64, tpu.core_type = #tpu.core_type<tc>, window_params = [{pipeline_mode = #tpu.pipeline_mode<synchronous>, transform_indices = @transform_0, window_bounds = array<i64: 8, 128>}, {pipeline_mode = #tpu.pipeline_mode<synchronous>, transform_indices = @transform_1, window_bounds = array<i64: 8, 128>}]} {
    %c0 = arith.constant 0 : index
    %c0_0 = arith.constant 0 : index
    %0 = vector.load %arg1[%c0, %c0_0] : memref<8x128xf32, #tpu.memory_space<vmem>>, vector<8x128xf32>
    %c0_1 = arith.constant 0 : index
    %c0_2 = arith.constant 0 : index
    %1 = vector.load %arg2[%c0_1, %c0_2] : memref<8x128xf32, #tpu.memory_space<vmem>>, vector<8x128xf32>
    tpu.vector_store %arg2[%c0_1, %c0_2], %0 {strides = array<i32>} : memref<8x128xf32, #tpu.memory_space<vmem>>, vector<8x128xf32>,
    return
  }
  func.func @transform_0(%arg0: i32) -> (i32, i32) {
    %c0_i32 = arith.constant 0 : i32
    %c0_i32_0 = arith.constant 0 : i32
    %c0_i32_1 = arith.constant 0 : i32
    return %c0_i32, %c0_i32_0 : i32, i32
  }
  func.func @transform_1(%arg0: i32) -> (i32, i32) {
    %c0_i32 = arith.constant 0 : i32
    %c0_i32_0 = arith.constant 0 : i32
    %c0_i32_1 = arith.constant 0 : i32
    return %c0_i32, %c0_i32_0 : i32, i32
  }
}

module attributes {stable_mosaic.version = 11 : i64} {
  func.func @_bert_head_transform_kernel(%arg0: i32, %arg1: memref<8x32xf32, #tpu.memory_space<vmem>>, %arg2: memref<32x32xf32, #tpu.memory_space<vmem>>, %arg3: memref<3x32xf32, #tpu.memory_space<vmem>>, %arg4: memref<8x32xf32, #tpu.memory_space<vmem>>) attributes {dimension_semantics = [#tpu.dimension_semantics<parallel>], iteration_bounds = array<i64: 2>, scalar_prefetch = 0 : i64, scratch_operands = 0 : i64, tpu.core_type = #tpu.core_type<tc>, window_params = [{transform_indices = @transform_0, window_bounds = array<i64: 8, 32>}, {pipeline_mode = #tpu.pipeline_mode<synchronous>, transform_indices = @transform_1, window_bounds = array<i64: 32, 32>}, {pipeline_mode = #tpu.pipeline_mode<synchronous>, transform_indices = @transform_2, window_bounds = array<i64: 3, 32>}, {transform_indices = @transform_3, window_bounds = array<i64: 8, 32>}]} {
    %c0 = arith.constant 0 : index
    %c0_0 = arith.constant 0 : index
    %0 = vector.load %arg1[%c0, %c0_0] : memref<8x32xf32, #tpu.memory_space<vmem>>, vector<8x32xf32>
    %c0_1 = arith.constant 0 : index
    %c0_2 = arith.constant 0 : index
    %1 = vector.load %arg2[%c0_1, %c0_2] : memref<32x32xf32, #tpu.memory_space<vmem>>, vector<32x32xf32>
    %cst = arith.constant dense<0.000000e+00> : vector<8x32xf32>
    %2 = tpu.matmul %0, %1, %cst {dimension_numbers = #tpu.dot_dimension_numbers<[1], [0], [0], [1], [0, 0, 1, 1], [], []>} : vector<8x32xf32>, vector<32x32xf32>, vector<8x32xf32> -> vector<8x32xf32>
    %c0_3 = arith.constant 0 : index
    %c0_4 = arith.constant 0 : index
    %3 = vector.load %arg3[%c0_3, %c0_4] : memref<3x32xf32, #tpu.memory_space<vmem>>, vector<3x32xf32>
    %4 = vector.extract_strided_slice %3 {offsets = [0, 0], sizes = [1, 32], strides = [1, 1]} : vector<3x32xf32> to vector<1x32xf32>
    %5 = vector.broadcast %4 : vector<1x32xf32> to vector<8x32xf32>
    %6 = arith.addf %2, %5 : vector<8x32xf32>
    %cst_5 = arith.constant 5.000000e-01 : f32
    %7 = vector.broadcast %cst_5 : f32 to vector<8x32xf32>
    %8 = arith.mulf %7, %6 : vector<8x32xf32>
    %cst_6 = arith.constant 0.707106769 : f32
    %9 = vector.broadcast %cst_6 : f32 to vector<8x32xf32>
    %10 = arith.mulf %6, %9 : vector<8x32xf32>
    %11 = math.erf %10 : vector<8x32xf32>
    %cst_7 = arith.constant 1.000000e+00 : f32
    %12 = vector.broadcast %cst_7 : f32 to vector<8x32xf32>
    %13 = arith.addf %12, %11 : vector<8x32xf32>
    %14 = arith.mulf %8, %13 : vector<8x32xf32>
    %cst_8 = arith.constant dense<0.000000e+00> : vector<8xf32>
    %15 = vector.multi_reduction <add>, %14, %cst_8 [1] : vector<8x32xf32> to vector<8xf32>
    %16 = vector.shape_cast %15 : vector<8xf32> to vector<8x1xf32>
    %cst_9 = arith.constant 3.200000e+01 : f32
    %17 = vector.broadcast %cst_9 : f32 to vector<8x1xf32>
    %18 = arith.divf %16, %17 : vector<8x1xf32>
    %19 = vector.broadcast %18 : vector<8x1xf32> to vector<8x32xf32>
    %20 = arith.subf %14, %19 : vector<8x32xf32>
    %21 = arith.mulf %20, %20 : vector<8x32xf32>
    %cst_10 = arith.constant dense<0.000000e+00> : vector<8xf32>
    %22 = vector.multi_reduction <add>, %21, %cst_10 [1] : vector<8x32xf32> to vector<8xf32>
    %23 = vector.shape_cast %22 : vector<8xf32> to vector<8x1xf32>
    %cst_11 = arith.constant 3.200000e+01 : f32
    %24 = vector.broadcast %cst_11 : f32 to vector<8x1xf32>
    %25 = arith.divf %23, %24 : vector<8x1xf32>
    %cst_12 = arith.constant 9.99999996E-13 : f32
    %26 = vector.broadcast %cst_12 : f32 to vector<8x1xf32>
    %27 = arith.addf %25, %26 : vector<8x1xf32>
    %28 = math.rsqrt %27 : vector<8x1xf32>
    %29 = vector.broadcast %28 : vector<8x1xf32> to vector<8x32xf32>
    %30 = arith.mulf %20, %29 : vector<8x32xf32>
    %31 = vector.extract_strided_slice %3 {offsets = [1, 0], sizes = [1, 32], strides = [1, 1]} : vector<3x32xf32> to vector<1x32xf32>
    %32 = vector.broadcast %31 : vector<1x32xf32> to vector<8x32xf32>
    %33 = arith.mulf %30, %32 : vector<8x32xf32>
    %34 = vector.extract_strided_slice %3 {offsets = [2, 0], sizes = [1, 32], strides = [1, 1]} : vector<3x32xf32> to vector<1x32xf32>
    %35 = vector.broadcast %34 : vector<1x32xf32> to vector<8x32xf32>
    %36 = arith.addf %33, %35 : vector<8x32xf32>
    %c0_13 = arith.constant 0 : index
    %c0_14 = arith.constant 0 : index
    %37 = vector.load %arg4[%c0_13, %c0_14] : memref<8x32xf32, #tpu.memory_space<vmem>>, vector<8x32xf32>
    tpu.vector_store %arg4[%c0_13, %c0_14], %36 {strides = array<i32>} : memref<8x32xf32, #tpu.memory_space<vmem>>, vector<8x32xf32>,
    return
  }
  func.func @transform_0(%arg0: i32) -> (i32, i32) {
    %c0_i32 = arith.constant 0 : i32
    %c0_i32_0 = arith.constant 0 : i32
    return %arg0, %c0_i32 : i32, i32
  }
  func.func @transform_1(%arg0: i32) -> (i32, i32) {
    %c0_i32 = arith.constant 0 : i32
    %c0_i32_0 = arith.constant 0 : i32
    %c0_i32_1 = arith.constant 0 : i32
    return %c0_i32, %c0_i32_0 : i32, i32
  }
  func.func @transform_2(%arg0: i32) -> (i32, i32) {
    %c0_i32 = arith.constant 0 : i32
    %c0_i32_0 = arith.constant 0 : i32
    %c0_i32_1 = arith.constant 0 : i32
    return %c0_i32, %c0_i32_0 : i32, i32
  }
  func.func @transform_3(%arg0: i32) -> (i32, i32) {
    %c0_i32 = arith.constant 0 : i32
    %c0_i32_0 = arith.constant 0 : i32
    return %arg0, %c0_i32 : i32, i32
  }
}

</mosaic_0001>

<llo_original>
// kernel: tpu_custom_call.1
$region0: #{tpu_custom_call.1}
  #allocation0 [shape = 'u32[]', space=smem, size = 0x4, offset = 0x4, fixed_abs, tag = 'smem constant byte address 0x4 - core index']
  #allocation1 [shape = 'u32[144,128]{1,0:T(1,128)}', space=vmem, size = 0x12000, scoped, tag = 'internal scratch']
  %s0 = inlined_call_operand.hbm [shape: f32[8,128], index: 0, kind: input, shape index: {}]
  %s1 = inlined_call_operand.hbm [shape: f32[8,128], index: 1, kind: output, shape index: {}]
  %s2 = sld [smem:[#allocation0]]
  $region18: #{tpu_custom_call.1} parent=0
    _
  %s4 = ssub.s32 1, %s2
  %s5 = scalar_select 0, %s4, %s2
  $region1: #{tpu_custom_call.1} parent=0
    #allocation2 [shape = 'u8[4096]{0}', space=vmem, size = 0x1000, scoped, tag = 'input window, operand 0, single buffered']
    #allocation3 [shape = 's32[1]{0}', space=sflag, size = 0x4, scoped, tag = 'scoped memory for tpu_custom_call.1']
    #allocation4 [shape = 's32[1]{0}', space=sflag, size = 0x4, scoped, tag = 'scoped memory for tpu_custom_call.1']
    #allocation5 [shape = 'u8[4096]{0}', space=vmem, size = 0x1000, scoped, tag = 'output window, operand 0, single buffered']
    %6 = vsyncpa [#allocation3], 0
    %7 = vsyncpa [#allocation4], 0
    // Predicated region
    $region2: #{tpu_custom_call.1} parent=1 // pred_check
      _
    $region3: #{tpu_custom_call.1} parent=1 // pred_check_branch
      %9 = sbr.rel (0) target = $region5
    $region4: #{tpu_custom_call.1} parent=1 // pred_region
      %s11 = ssub.s32 128, 128
      %12 = vsyncadd [#allocation3], %s11
      %s14 = sshll.u32 [#allocation2], 4
      %s15 = int_to_ptr.vmem [resolvable:$true] %s14
      %17 = dma.hbm_to_vmem [thread:$0]  %s0, 128, %s15, [#allocation3]
    $region5: #{tpu_custom_call.1} parent=1 // pred_fallthru
      _
    // Predicated region
    $region6: #{tpu_custom_call.1} parent=1 // pred_check
      _
    $region7: #{tpu_custom_call.1} parent=1 // pred_check_branch
      %19 = sbr.rel (0) target = $region9
    $region8: #{tpu_custom_call.1} parent=1 // pred_region
      %20 = dma.done [#allocation3], 128
    $region9: #{tpu_custom_call.1} parent=1 // pred_fallthru
      _
    %v21 = vld [vmem:[#allocation2] sm:$0xff]
    %22 = vst [vmem:[#allocation5] sm:$0xff] %v21
    // Predicated region
    $region10: #{tpu_custom_call.1} parent=1 // pred_check
      _
    $region11: #{tpu_custom_call.1} parent=1 // pred_check_branch
      %24 = sbr.rel (0) target = $region13
    $region12: #{tpu_custom_call.1} parent=1 // pred_region
      %s26 = ssub.s32 128, 128
      %27 = vsyncadd [#allocation4], %s26
      %s29 = sshll.u32 [#allocation5], 4
      %s30 = int_to_ptr.vmem [resolvable:$true] %s29
      %32 = dma.vmem_to_hbm [thread:$0]  %s30, 128, %s1, [#allocation4]
    $region13: #{tpu_custom_call.1} parent=1 // pred_fallthru
      _
    // Predicated region
    $region14: #{tpu_custom_call.1} parent=1 // pred_check
      _
    $region15: #{tpu_custom_call.1} parent=1 // pred_check_branch
      %34 = sbr.rel (0) target = $region17
    $region16: #{tpu_custom_call.1} parent=1 // pred_region
      %35 = dma.done [#allocation4], 128
    $region17: #{tpu_custom_call.1} parent=1 // pred_fallthru
      _
    %36 = vsyncpa [#allocation3], 1
    %37 = vsyncpa [#allocation4], 1

// kernel: tpu_custom_call.1
$region0: #{tpu_custom_call.1}
  #allocation0 [shape = 'u32[]', space=smem, size = 0x4, offset = 0x4, fixed_abs, tag = 'smem constant byte address 0x4 - core index']
  #allocation1 [shape = 'u32[144,128]{1,0:T(1,128)}', space=vmem, size = 0x12000, scoped, tag = 'internal scratch']
  %s0 = inlined_call_operand.hbm [shape: f32[16,32], index: 0, kind: input, shape index: {}]
  %s1 = inlined_call_operand.hbm [shape: f32[32,32], index: 1, kind: input, shape index: {}]
  %s2 = inlined_call_operand.vmem [shape: f32[3,32], index: 2, kind: input, shape index: {}]
  %s3 = inlined_call_operand.hbm [shape: f32[16,32], index: 3, kind: output, shape index: {}]
  %s4 = sld [smem:[#allocation0]]
  $region53: #{tpu_custom_call.1} parent=0
    _
  %s6 = ssub.s32 1, %s4
  %s7 = scalar_select 0, %s6, %s4
  $region1: #{tpu_custom_call.1} parent=0
    #allocation2 [shape = 'u8[8192]{0}', space=vmem, size = 0x2000, scoped, tag = 'input window, operand 0']
    #allocation3 [shape = 's32[2]{0}', space=sflag, size = 0x8, scoped, tag = 'scoped memory for tpu_custom_call.1']
    #allocation4 [shape = 's32[2]{0}', space=sflag, size = 0x8, scoped, tag = 'scoped memory for tpu_custom_call.1']
    #allocation5 [shape = 'u8[16384]{0}', space=vmem, size = 0x4000, scoped, tag = 'input window, operand 1, single buffered']
    #allocation6 [shape = 's32[1]{0}', space=sflag, size = 0x4, scoped, tag = 'scoped memory for tpu_custom_call.1']
    #allocation7 [shape = 'u8[8192]{0}', space=vmem, size = 0x2000, scoped, tag = 'output window, operand 0']
    %8 = vsyncpa [#allocation3], 0
    %s9 = scalar_lea.sflag [#allocation3], 1
    %10 = vsyncpa %s9, 0
    %11 = vsyncpa [#allocation6], 0
    %12 = vsyncpa [#allocation4], 0
    %s13 = scalar_lea.sflag [#allocation4], 1
    %14 = vsyncpa %s13, 0
    loop: start=0, step=1, limit=4
    $region2: #{tpu_custom_call.1} parent=1 // loop_pre_header
      _
    $region3: #{tpu_custom_call.1} parent=1 // loop_header
      %s16 = sphi 0, %s20
      %p17 = scmp.ge.s32.totalorder %s16, 4
      %s26 = sphi 0, %s28
      %s29 = sphi 0, %s26
      %s30 = sphi 0, %s29
      %s46 = sphi 0, %s30
      %s50 = sphi 0, %s50
      %s52 = sphi 0, %s50
      %s53 = sphi 0, %s52
      %s67 = sphi 0, %s53
      %s71 = sphi 0, %s71
      %s73 = sphi 0, %s71
      %s74 = sphi 0, %s73
      %s88 = sphi 0, %s74
      %s94 = sphi 0, %s96
      %s97 = sphi 0, %s94
      %s98 = sphi 0, %s97
      %s114 = sphi 0, %s98
    $region4: #{tpu_custom_call.1} parent=1 // loop_header_branch
      %19 = sbr.rel (%p17) target = $region8
    $region5: #{tpu_custom_call.1} parent=1 // loop_body
      %s21 = ssub.s32 %s16, 1
      %s22 = ssub.s32 %s16, 2
      %s23 = sadd.s32 %s16, 1
      %s24 = ssub.s32 %s16, %s23
      %p25 = scmp.eq.s32.totalorder %s24, 0
      %s27 = sadd.s32 %s26, 1
      %s28 = scalar_select %p25, %s26, %s27
      %p31 = pneg %p25
      %p32 = scmp.eq.s32.totalorder %s16, 1
      %p33 = por %p31, %p32
      %p34 = scmp.ne.s32.totalorder %s26, %s29
      %p35 = scmp.eq.s32.totalorder %s16, 0
      %p36 = por %p34, %p35
      %p37 = scmp.ne.s32.totalorder %s26, %s29
      %p38 = scmp.eq.s32.totalorder %s21, 1
      %p39 = por %p37, %p38
      %p40 = scmp.ne.s32.totalorder %s29, %s30
      %p41 = scmp.eq.s32.totalorder %s21, 0
      %p42 = por %p40, %p41
      %p43 = scmp.ne.s32.totalorder %s29, %s30
      %p44 = scmp.eq.s32.totalorder %s22, 1
      %p45 = por %p43, %p44
      %p47 = scmp.ne.s32.totalorder %s30, %s46
      %p48 = scmp.eq.s32.totalorder %s22, 0
      %p49 = por %p47, %p48
      %s51 = sadd.s32 %s50, 1
      %p54 = scmp.eq.s32.totalorder %s16, 1
      %p55 = scmp.ne.s32.totalorder %s50, %s52
      %p56 = scmp.eq.s32.totalorder %s16, 0
      %p57 = por %p55, %p56
      %p58 = scmp.ne.s32.totalorder %s50, %s52
      %p59 = scmp.eq.s32.totalorder %s21, 1
      %p60 = por %p58, %p59
      %p61 = scmp.ne.s32.totalorder %s52, %s53
      %p62 = scmp.eq.s32.totalorder %s21, 0
      %p63 = por %p61, %p62
      %p64 = scmp.ne.s32.totalorder %s52, %s53
      %p65 = scmp.eq.s32.totalorder %s22, 1
      %p66 = por %p64, %p65
      %p68 = scmp.ne.s32.totalorder %s53, %s67
      %p69 = scmp.eq.s32.totalorder %s22, 0
      %p70 = por %p68, %p69
      %s72 = sadd.s32 %s71, 1
      %p75 = scmp.eq.s32.totalorder %s16, 1
      %p76 = scmp.ne.s32.totalorder %s71, %s73
      %p77 = scmp.eq.s32.totalorder %s16, 0
      %p78 = por %p76, %p77
      %p79 = scmp.ne.s32.totalorder %s71, %s73
      %p80 = scmp.eq.s32.totalorder %s21, 1
      %p81 = por %p79, %p80
      %p82 = scmp.ne.s32.totalorder %s73, %s74
      %p83 = scmp.eq.s32.totalorder %s21, 0
      %p84 = por %p82, %p83
      %p85 = scmp.ne.s32.totalorder %s73, %s74
      %p86 = scmp.eq.s32.totalorder %s22, 1
      %p87 = por %p85, %p86
      %p89 = scmp.ne.s32.totalorder %s74, %s88
      %p90 = scmp.eq.s32.totalorder %s22, 0
      %p91 = por %p89, %p90
      %s92 = ssub.s32 %s16, %s23
      %p93 = scmp.eq.s32.totalorder %s92, 0
      %s95 = sadd.s32 %s94, 1
      %s96 = scalar_select %p93, %s94, %s95
      %p99 = pneg %p93
      %p100 = scmp.eq.s32.totalorder %s16, 1
      %p101 = por %p99, %p100
      %p102 = scmp.ne.s32.totalorder %s94, %s97
      %p103 = scmp.eq.s32.totalorder %s16, 0
      %p104 = por %p102, %p103
      %p105 = scmp.ne.s32.totalorder %s94, %s97
      %p106 = scmp.eq.s32.totalorder %s21, 1
      %p107 = por %p105, %p106
      %p108 = scmp.ne.s32.totalorder %s97, %s98
      %p109 = scmp.eq.s32.totalorder %s21, 0
      %p110 = por %p108, %p109
      %p111 = scmp.ne.s32.totalorder %s97, %s98
      %p112 = scmp.eq.s32.totalorder %s22, 1
      %p113 = por %p111, %p112
      %p115 = scmp.ne.s32.totalorder %s98, %s114
      %p116 = scmp.eq.s32.totalorder %s22, 0
      %p117 = por %p115, %p116
      %p118 = scmp.le.s32.totalorder 1, %s16
      %p119 = scmp.lt.s32.totalorder %s16, 3
      %p120 = pnand %p118, %p119
      %p121 = pneg %p120
      // Predicated region
      $region9: #{tpu_custom_call.1} parent=5 // pred_check
        _
      $region10: #{tpu_custom_call.1} parent=5 // pred_check_branch
        %123 = sbr.rel (%p120) target = $region12
      $region11: #{tpu_custom_call.1} parent=5 // pred_region
        %s124 = ssub.s32 %s16, 1
        // Predicated region
        $region13: #{tpu_custom_call.1} parent=11 // pred_check
          %p125 = pneg %p63
        $region14: #{tpu_custom_call.1} parent=11 // pred_check_branch
          %127 = sbr.rel (%p125) target = $region16
        $region15: #{tpu_custom_call.1} parent=11 // pred_region
          %s129 = ssub.s32 512, 512
          %130 = vsyncadd [#allocation6], %s129
          %s131 = sshll.u32 [#allocation5], 4
          %s132 = int_to_ptr.vmem [resolvable:$true] %s131
          %137 = dma.hbm_to_vmem [thread:$0]  %s1, 512, %s132, [#allocation6], 128, 128, 8
        $region16: #{tpu_custom_call.1} parent=11 // pred_fallthru
          _
        // Predicated region
        $region17: #{tpu_custom_call.1} parent=11 // pred_check
          %p138 = pneg %p84
        $region18: #{tpu_custom_call.1} parent=11 // pred_check_branch
          %140 = sbr.rel (%p138) target = $region20
        $region19: #{tpu_custom_call.1} parent=11 // pred_region
          _
        $region20: #{tpu_custom_call.1} parent=11 // pred_fallthru
          _
      $region12: #{tpu_custom_call.1} parent=5 // pred_fallthru
        _
      %p141 = scmp.lt.s32.totalorder %s16, 2
      // Predicated region
      $region21: #{tpu_custom_call.1} parent=5 // pred_check
        %p142 = pneg %p141
      $region22: #{tpu_custom_call.1} parent=5 // pred_check_branch
        %144 = sbr.rel (%p142) target = $region24
      $region23: #{tpu_custom_call.1} parent=5 // pred_region
        // Predicated region
        $region25: #{tpu_custom_call.1} parent=23 // pred_check
          %p145 = pneg %p36
        $region26: #{tpu_custom_call.1} parent=23 // pred_check_branch
          %147 = sbr.rel (%p145) target = $region28
        $region27: #{tpu_custom_call.1} parent=23 // pred_region
          %s148 = sand.u32 %s26, 1
          %s149 = scalar_lea.sflag [#allocation3], %s148
          %s150 = sand.u32 %s26, 1
          %s151 = smul.addr %s150, 8
          %s152 = scalar_lea.vmem [#allocation2], %s151
          %s154 = ssub.s32 128, 128
          %155 = vsyncadd %s149, %s154
          %s156 = smul.addr %s16, 128
          %s157 = scalar_lea.hbm %s0, %s156
          %s159 = sshll.u32 %s152, 4
          %s160 = int_to_ptr.vmem [resolvable:$true] %s159
          %162 = dma.hbm_to_vmem [thread:$0]  %s157, 128, %s160, %s149
        $region28: #{tpu_custom_call.1} parent=23 // pred_fallthru
          _
      $region24: #{tpu_custom_call.1} parent=5 // pred_fallthru
        _
      %p163 = scmp.le.s32.totalorder 1, %s16
      %p164 = scmp.lt.s32.totalorder %s16, 3
      %p165 = pnand %p163, %p164
      %p166 = pneg %p165
      // Predicated region
      $region29: #{tpu_custom_call.1} parent=5 // pred_check
        _
      $region30: #{tpu_custom_call.1} parent=5 // pred_check_branch
        %168 = sbr.rel (%p165) target = $region32
      $region31: #{tpu_custom_call.1} parent=5 // pred_region
        %s169 = ssub.s32 %s16, 1
        %s170 = sand.u32 %s29, 1
        %s171 = scalar_lea.sflag [#allocation3], %s170
        %s172 = sand.u32 %s29, 1
        %s173 = smul.addr %s172, 8
        %s174 = scalar_lea.vmem [#allocation2], %s173
        // Predicated region
        $region33: #{tpu_custom_call.1} parent=31 // pred_check
          %p175 = pneg %p42
        $region34: #{tpu_custom_call.1} parent=31 // pred_check_branch
          %177 = sbr.rel (%p175) target = $region36
        $region35: #{tpu_custom_call.1} parent=31 // pred_region
          %178 = dma.done %s171, 128
        $region36: #{tpu_custom_call.1} parent=31 // pred_fallthru
          _
        // Predicated region
        $region37: #{tpu_custom_call.1} parent=31 // pred_check
          %p179 = pneg %p63
        $region38: #{tpu_custom_call.1} parent=31 // pred_check_branch
          %181 = sbr.rel (%p179) target = $region40
        $region39: #{tpu_custom_call.1} parent=31 // pred_region
          %182 = dma.done [#allocation6], 512
        $region40: #{tpu_custom_call.1} parent=31 // pred_fallthru
          _
        %s183 = sand.u32 %s29, 1
        %s184 = scalar_lea.sflag [#allocation3], %s183
        %s185 = sand.u32 %s29, 1
        %s186 = smul.addr %s185, 8
        %s187 = scalar_lea.vmem [#allocation2], %s186
        %p188 = pneg %p42
        %p189 = pneg %p39
        %p190 = pneg %p63
        %p191 = pneg %p60
        %p192 = pneg %p84
        %p193 = pneg %p81
        %p194 = pneg %p110
        %p195 = pneg %p107
        %s196 = sand.u32 %s97, 1
        %s197 = scalar_lea.sflag [#allocation4], %s196
        %s198 = sand.u32 %s97, 1
        %s199 = smul.addr %s198, 8
        %s200 = scalar_lea.vmem [#allocation7], %s199
        %v201 = vld [vmem:[%s174] sm:$0xff]
        %v202 = vld [vmem:[#allocation5] sm:$0xff]
        %v203 = vld [vmem:[#allocation5 + $0x8] sm:$0xff]
        %v204 = vld [vmem:[#allocation5 + $0x10] sm:$0xff]
        %v205 = vld [vmem:[#allocation5 + $0x18] sm:$0xff]
        %v206 = vld [vmem:[%s2] sm:$0x7]
        %v207 = vlaneseq
        %v208 = vshrl.u32 %v207, 7
        %v209 = vsub.s32 0, %v208
        %v210 = vrot.slane %v206, %v209
        %vm211 = vcmask 261120
        %v213 = vsel %vm211, %v201, 0
        %215 = vmatprep.subr.mxu0 0.0
        %216 = vmatpush1.msra.mxu0 %v202
        %217 = vmatprep.subr.mxu0 0.0
        %218 = vmatpush1.msra.mxu0 %v203
        %219 = vmatprep.subr.mxu0 0.0
        %220 = vmatpush1.msra.mxu0 %v204
        %221 = vmatprep.subr.mxu0 0.0
        %222 = vmatpush1.msra.mxu0 %v205
        %223 = vmatprep.subr.mxu0 0.0
        %224 = vmatpush1.msra.mxu0 0.0
        %225 = vmatprep.subr.mxu0 0.0
        %226 = vmatpush1.msra.mxu0 0.0
        %227 = vmatprep.subr.mxu0 0.0
        %228 = vmatpush1.msra.mxu0 0.0
        %229 = vmatprep.subr.mxu0 0.0
        %230 = vmatpush1.msra.mxu0 0.0
        %231 = vmatprep.subr.mxu0 0.0
        %232 = vmatpush1.msra.mxu0 0.0
        %233 = vmatprep.subr.mxu0 0.0
        %234 = vmatpush1.msra.mxu0 0.0
        %235 = vmatprep.subr.mxu0 0.0
        %236 = vmatpush1.msra.mxu0 0.0
        %237 = vmatprep.subr.mxu0 0.0
        %238 = vmatpush1.msra.mxu0 0.0
        %239 = vmatprep.subr.mxu0 0.0
        %240 = vmatpush1.msra.mxu0 0.0
        %241 = vmatprep.subr.mxu0 0.0
        %242 = vmatpush1.msra.mxu0 0.0
        %243 = vmatprep.subr.mxu0 0.0
        %244 = vmatpush1.msra.mxu0 0.0
        %245 = vmatprep.subr.mxu0 0.0
        %246 = vmatpush1.msra.mxu0 0.0
        %247 = vmatprep.subr.mxu0 0.0
        %248 = vmatpush1.msra.mxu0 0.0
        %249 = vmatprep.subr.mxu0 0.0
        %250 = vmatpush1.msra.mxu0 0.0
        %251 = vmatprep.subr.mxu0 0.0
        %252 = vmatpush1.msra.mxu0 0.0
        %253 = vmatprep.subr.mxu0 0.0
        %254 = vmatpush1.msra.mxu0 0.0
        %255 = vmatprep.subr.mxu0 0.0
        %256 = vmatpush1.msra.mxu0 0.0
        %257 = vmatprep.subr.mxu0 0.0
        %258 = vmatpush1.msra.mxu0 0.0
        %259 = vmatprep.subr.mxu0 0.0
        %260 = vmatpush1.msra.mxu0 0.0
        %261 = vmatprep.subr.mxu0 0.0
        %262 = vmatpush1.msra.mxu0 0.0
        %263 = vmatprep.subr.mxu0 0.0
        %264 = vmatpush1.msra.mxu0 0.0
        %265 = vmatprep.subr.mxu0 0.0
        %266 = vmatpush1.msra.mxu0 0.0
        %267 = vmatprep.subr.mxu0 0.0
        %268 = vmatpush1.msra.mxu0 0.0
        %269 = vmatprep.subr.mxu0 0.0
        %270 = vmatpush1.msra.mxu0 0.0
        %271 = vmatprep.subr.mxu0 0.0
        %272 = vmatpush1.msra.mxu0 0.0
        %273 = vmatprep.subr.mxu0 0.0
        %274 = vmatpush1.msra.mxu0 0.0
        %275 = vmatprep.subr.mxu0 0.0
        %276 = vmatpush1.msra.mxu0 0.0
        %277 = vmatprep.subr.mxu0 0.0
        %278 = vmatpush1.msra.mxu0 0.0
        %279 = vmatprep.mubr.f32.mxu0 0.0
        %280 = vmatmul.mubr.f32.gmra.mrb[0].mxu0 %v213
        %v281 = vpop.f32.mrb[0].mxu0
        %v282 = vadd.f32 %v210, %v281
        %v283 = vpop.f32.mrb[0].mxu0
        %284 = vdwg.mxu0
        %v285 = vmul.f32 %v282, 0.5
        %v286 = vmul.f32 %v282, 0.70710677
        %v287 = verf.f32.pop %v286
        %v288 = vadd.f32 %v287, 1.0
        %v289 = vmul.f32 %v285, %v288
        %v290 = vsel %vm211, %v289, 0.0
        %291 = vadd.xlane.f32.xlu0 %v290
        %v292 = vpop.xlane.xlu0 %291
        %v293 = vrcp.pop 32.0
        %v294 = vmul.f32 %v292, %v293
        %v295 = vsub.f32 %v289, %v294
        %v296 = vmul.f32 %v295, %v295
        %v297 = vsel %vm211, %v296, 0.0
        %298 = vadd.xlane.f32.xlu0 %v297
        %v299 = vpop.xlane.xlu0 %298
        %v300 = vmul.f32 %v299, %v293
        %v301 = vadd.f32 %v300, 1e-12
        %v302 = vrsqrt.pop %v301
        %v303 = vmul.f32 %v295, %v302
        %v304 = vlaneseq
        %v305 = vshrl.u32 %v304, 7
        %v306 = vsub.s32 1, %v305
        %v307 = vrot.slane %v206, %v306
        %v308 = vmul.f32 %v303, %v307
        %v309 = vlaneseq
        %v310 = vshrl.u32 %v309, 7
        %v311 = vsub.s32 2, %v310
        %v312 = vrot.slane %v206, %v311
        %v313 = vadd.f32 %v308, %v312
        %314 = vst.msk [vmem:[%s200] sm:$0xff] %vm211, %v313
        %s315 = sand.u32 %s97, 1
        %s316 = scalar_lea.sflag [#allocation4], %s315
        %s317 = sand.u32 %s97, 1
        %s318 = smul.addr %s317, 8
        %s319 = scalar_lea.vmem [#allocation7], %s318
        // Predicated region
        $region41: #{tpu_custom_call.1} parent=31 // pred_check
          %p320 = pneg %p107
        $region42: #{tpu_custom_call.1} parent=31 // pred_check_branch
          %322 = sbr.rel (%p320) target = $region44
        $region43: #{tpu_custom_call.1} parent=31 // pred_region
          %s324 = ssub.s32 128, 128
          %325 = vsyncadd %s316, %s324
          %s326 = smul.addr %s21, 128
          %s327 = scalar_lea.hbm %s3, %s326
          %s329 = sshll.u32 %s319, 4
          %s330 = int_to_ptr.vmem [resolvable:$true] %s329
          %332 = dma.vmem_to_hbm [thread:$0]  %s330, 128, %s327, %s316
        $region44: #{tpu_custom_call.1} parent=31 // pred_fallthru
          _
      $region32: #{tpu_custom_call.1} parent=5 // pred_fallthru
        _
      %p333 = scmp.le.s32.totalorder 2, %s16
      // Predicated region
      $region45: #{tpu_custom_call.1} parent=5 // pred_check
        %p334 = pneg %p333
      $region46: #{tpu_custom_call.1} parent=5 // pred_check_branch
        %336 = sbr.rel (%p334) target = $region48
      $region47: #{tpu_custom_call.1} parent=5 // pred_region
        %s337 = ssub.s32 %s16, 2
        // Predicated region
        $region49: #{tpu_custom_call.1} parent=47 // pred_check
          %p338 = pneg %p113
        $region50: #{tpu_custom_call.1} parent=47 // pred_check_branch
          %340 = sbr.rel (%p338) target = $region52
        $region51: #{tpu_custom_call.1} parent=47 // pred_region
          %s341 = sand.u32 %s98, 1
          %s342 = scalar_lea.sflag [#allocation4], %s341
          %s343 = sand.u32 %s98, 1
          %s344 = smul.addr %s343, 8
          %s345 = scalar_lea.vmem [#allocation7], %s344
          %346 = dma.done %s342, 128
        $region52: #{tpu_custom_call.1} parent=47 // pred_fallthru
          _
      $region48: #{tpu_custom_call.1} parent=5 // pred_fallthru
        _
    $region6: #{tpu_custom_call.1} parent=1 // loop_footer
      %s20 = sadd.s32 1, %s16
    $region7: #{tpu_custom_call.1} parent=1 // loop_footer_branch
      %15 = sbr.rel target = $region3
    $region8: #{tpu_custom_call.1} parent=1 // loop_exit
      _
    %347 = vsyncpa [#allocation3], 1
    %s348 = scalar_lea.sflag [#allocation3], 1
    %349 = vsyncpa %s348, 1
    %350 = vsyncpa [#allocation6], 1
    %351 = vsyncpa [#allocation4], 1
    %s352 = scalar_lea.sflag [#allocation4], 1
    %353 = vsyncpa %s352, 1

</llo_original>
